<compile_context>
chip_gen: v6e
topology: v6e:2x2x1
jax: 0.10.0
libtpu: 0.0.40
codegen_flags: <defaults>
</compile_context>

<pallas_src>
import functools

import jax
import jax.numpy as jnp
from jax.experimental import pallas as pl
from jax.experimental.pallas import tpu as pltpu


# ---------------------------------------------------------------------------
# Activation math
# ---------------------------------------------------------------------------

# act_ids with 8 slopes: x < b0 -> w0, [b0,b1) -> w1, ..., x >= b6 -> w7
_MUL8_BOUNDS = {
    -1: (-7.0, -3.0, -1.0, 0.0, 1.0, 3.0, 7.0),
    -2: (-15.0, -7.0, -3.0, 0.0, 3.0, 7.0, 15.0),
    -3: (-3.0, -2.0, -1.0, 0.0, 1.0, 2.0, 3.0),
    -9: (-40.0, -31.0, -22.0, -15.0, -7.0, -3.0, 0.0),
}

# act_ids with 4 slopes on the negative side, identity otherwise
_MUL4_BOUNDS = {
    -4: (-7.0, -3.0, -1.0, 0.0),
    -5: (-3.0, -2.0, -1.0, 0.0),
    -6: (-15.0, -7.0, -3.0, 0.0),
    -7: (-31.0, -15.0, -7.0, 0.0),
    -8: (-63.0, -31.0, -15.0, 0.0),
    -10: (-45.0, -30.0, -15.0, 0.0),
}

_SELU_ALPHA = 1.6732632423543772
_SELU_SCALE = 1.0507009873554805


def _simple_activation(act_id, x, w):
    """act_ids 1..8 (shared by kernel and reference)."""
    if act_id == 1:      # ReLU
        return jnp.maximum(x, 0.0)
    if act_id == 2:      # LeakyReLU (default negative_slope=0.01)
        return jnp.where(x >= 0, x, 0.01 * x)
    if act_id == 3:      # PReLU (single learnable slope)
        return jnp.where(x >= 0, x, w[0] * x)
    if act_id == 4:      # RReLU eval-mode slope = (1/8 + 1/3)/2
        # TODO(synk): train-mode RReLU samples a random slope per element;
        # the deterministic eval-mode behaviour is implemented here.
        slope = (1.0 / 8.0 + 1.0 / 3.0) / 2.0
        return jnp.where(x >= 0, x, slope * x)
    if act_id == 5:      # ELU (alpha=1)   (exp(x)-1 kept verbatim; expm1 only differs ~1e-7)
        return jnp.where(x > 0, x, jnp.exp(x) - 1.0)
    if act_id == 6:      # SELU
        return _SELU_SCALE * jnp.where(x > 0, x, _SELU_ALPHA * (jnp.exp(x) - 1.0))
    if act_id == 7:      # x * sigmoid(x) per forward()
        return x * (1.0 / (1.0 + jnp.exp(-x)))
    if act_id == 8:      # ReLU6
        return jnp.clip(x, 0.0, 6.0)
    raise ValueError(f"unsupported act_id={act_id}")


def _piecewise_coeffs(act_id, w):
    """Per-segment (slope, intercept) so each segment is c + slope*x.
    Faithful to the PyTorch source (including the literal '1 +' intercepts in
    act_id 92's upper segments)."""
    if act_id == 91:
        bounds = (-7.0, -3.0, -1.0, 1.0, 3.0, 7.0)
        slopes = (w[2], w[1], w[0], 1.0, w[3], w[4], w[5])
        cs = (-1.0 - 2.0 * w[0] - 4.0 * w[1] + 7.0 * w[2],
              -1.0 - 2.0 * w[0] + 3.0 * w[1],
              -1.0 + w[0],
              0.0,
              1.0 - w[3],
              1.0 + 2.0 * w[3] - 3.0 * w[4],
              1.0 + 2.0 * w[3] + 4.0 * w[4] - 7.0 * w[5])
    elif act_id == 92:
        bounds = (-15.0, -7.0, -3.0, 3.0, 7.0, 15.0)
        slopes = (w[2], w[1], w[0], 1.0, w[3], w[4], w[5])
        cs = (-3.0 - 4.0 * w[0] - 8.0 * w[1] + 15.0 * w[2],
              -3.0 - 4.0 * w[0] + 7.0 * w[1],
              -3.0 + 3.0 * w[0],
              0.0,
              3.0 - 3.0 * w[3],
              1.0 + 4.0 * w[3] - 7.0 * w[4],          # '1 +' matches PyTorch source verbatim
              1.0 + 4.0 * w[3] + 8.0 * w[4] - 15.0 * w[5])
    elif act_id == 93:
        bounds = (-3.0, -2.0, -1.0, 1.0, 2.0, 3.0)
        slopes = (w[2], w[1], w[0], 1.0, w[3], w[4], w[5])
        cs = (-1.0 - w[0] - w[1] + 3.0 * w[2],
              -1.0 - w[0] + 2.0 * w[1],
              -1.0 + w[0],
              0.0,
              1.0 - w[3],
              1.0 + w[3] - 2.0 * w[4],
              1.0 + w[3] + w[4] - 3.0 * w[5])
    else:
        raise ValueError(f"unsupported act_id={act_id}")
    return bounds, slopes, cs


def _kernel_activation(act_id, x, w):
    """Optimized (slope-select + single multiply) kernel math."""
    if act_id in _MUL8_BOUNDS:
        bounds = _MUL8_BOUNDS[act_id]
        slope = w[7]
        for i in reversed(range(7)):
            slope = jnp.where(x < bounds[i], w[i], slope)
        return x * slope

    if act_id in _MUL4_BOUNDS:
        bounds = _MUL4_BOUNDS[act_id]
        slope = 1.0
        for i in reversed(range(4)):
            slope = jnp.where(x < bounds[i], w[i], slope)
        return x * slope

    if act_id in (91, 92, 93):
        bounds, slopes, cs = _piecewise_coeffs(act_id, w)
        slope = slopes[-1]
        c = cs[-1]
        for i in reversed(range(len(bounds))):
            lt = x < bounds[i]
            slope = jnp.where(lt, slopes[i], slope)
            c = jnp.where(lt, cs[i], c)
        return c + slope * x

    return _simple_activation(act_id, x, w)


def _reference_activation(act_id, x, w):
    """Pure-JAX transliteration of Activate.forward (used only for checking)."""
    if act_id in _MUL8_BOUNDS:
        bounds = _MUL8_BOUNDS[act_id]
        out = x * w[7]
        for i in reversed(range(7)):
            out = jnp.where(x < bounds[i], x * w[i], out)
        return out

    if act_id in _MUL4_BOUNDS:
        bounds = _MUL4_BOUNDS[act_id]
        out = x
        for i in reversed(range(4)):
            out = jnp.where(x < bounds[i], x * w[i], out)
        return out

    if act_id == 91:
        return jnp.where(
            x < -7, -1 + w[0] * (-3 + 1) + w[1] * (-7 + 3) + w[2] * (x + 7),
            jnp.where(
                x < -3, -1 + w[0] * (-3 + 1) + w[1] * (x + 3),
                jnp.where(
                    x < -1, -1 + w[0] * (x + 1),
                    jnp.where(
                        x < 1, x,
                        jnp.where(
                            x < 3, 1 + w[3] * (x - 1),
                            jnp.where(
                                x < 7, 1 + w[3] * (3 - 1) + w[4] * (x - 3),
                                1 + w[3] * (3 - 1) + w[4] * (7 - 3) + w[5] * (x - 7)))))))
    if act_id == 92:
        return jnp.where(
            x < -15, -3 + w[0] * (-7 + 3) + w[1] * (-15 + 7) + w[2] * (x + 15),
            jnp.where(
                x < -7, -3 + w[0] * (-7 + 3) + w[1] * (x + 7),
                jnp.where(
                    x < -3, -3 + w[0] * (x + 3),
                    jnp.where(
                        x < 3, x,
                        jnp.where(
                            x < 7, 3 + w[3] * (x - 3),
                            jnp.where(
                                x < 15, 1 + w[3] * (7 - 3) + w[4] * (x - 7),
                                1 + w[3] * (7 - 3) + w[4] * (15 - 7) + w[5] * (x - 15)))))))
    if act_id == 93:
        return jnp.where(
            x < -3, -1 + w[0] * (-2 + 1) + w[1] * (-3 + 2) + w[2] * (x + 3),
            jnp.where(
                x < -2, -1 + w[0] * (-2 + 1) + w[1] * (x + 2),
                jnp.where(
                    x < -1, -1 + w[0] * (x + 1),
                    jnp.where(
                        x < 1, x,
                        jnp.where(
                            x < 2, 1 + w[3] * (x - 1),
                            jnp.where(
                                x < 3, 1 + w[3] * (2 - 1) + w[4] * (x - 2),
                                1 + w[3] * (2 - 1) + w[4] * (3 - 2) + w[5] * (x - 3)))))))

    return _simple_activation(act_id, x, w)


# ---------------------------------------------------------------------------
# Pallas kernel + wrapper
# ---------------------------------------------------------------------------

def _make_kernel(act_id):
    def kernel(w_ref, x_ref, o_ref):
        # Compute in f32 regardless of input dtype (v5e VPU/EUP have no bf16 path).
        x = x_ref[...].astype(jnp.float32)
        w = [w_ref[i] for i in range(8)]   # scalars from SMEM
        o_ref[...] = _kernel_activation(act_id, x, w).astype(o_ref.dtype)
    return kernel


_LANE_CHOICES = (1024, 512, 256, 128)
_TARGET_BLOCK_ELEMS = 512 * 1024      # ~2 MiB f32 per block (x2 buffers x in/out ≈ 8 MiB live VMEM)


@functools.partial(jax.jit, static_argnames=("act_id",))
def activate_pallas(x, weight8, *, act_id):
    """Elementwise Activate.forward as a tiled, pipelined Pallas kernel."""
    orig_shape = x.shape
    dtype = x.dtype
    n = x.size

    # Pick the widest lane-dense last dim that divides n -> zero-copy reshape,
    # no pad/unpad HBM passes. Fall back to a single jnp.pad otherwise.
    lanes = None
    for cand in _LANE_CHOICES:
        if n % cand == 0:
            lanes = cand
            break
    flat = x.reshape(-1)
    padded = False
    if lanes is None:
        lanes = 1024 if n >= 1024 else 128
        flat = jnp.pad(flat, (0, (-n) % lanes))
        padded = True
    rows = flat.shape[0] // lanes
    slab = flat.reshape(rows, lanes)

    # ~2 MiB f32 blocks; tiny inputs collapse to a single full-dim block.
    tile_r = min(rows, max(8, _TARGET_BLOCK_ELEMS // lanes))
    num_tiles = pl.cdiv(rows, tile_r)   # partial last block handled by Pallas masking

    grid_spec = pltpu.PrefetchScalarGridSpec(
        num_scalar_prefetch=1,          # weight8 lands in SMEM
        grid=(num_tiles,),
        in_specs=[pl.BlockSpec((tile_r, lanes), lambda i, w: (i, 0))],
        out_specs=pl.BlockSpec((tile_r, lanes), lambda i, w: (i, 0)),
    )
    out = pl.pallas_call(
        _make_kernel(act_id),
        out_shape=jax.ShapeDtypeStruct((rows, lanes), dtype),
        grid_spec=grid_spec,
        compiler_params=pltpu.CompilerParams(
            dimension_semantics=("parallel",)),   # megacore sharding on v7x
    )(weight8, slab)

    out_flat = out.reshape(-1)
    if padded:
        out_flat = out_flat[:n]
    return out_flat.reshape(orig_shape)


def make_weight(act_id, key, init=1.0):
    """Parameter construction mirroring Activate.__init__, padded to 8 f32."""
    w8 = jnp.zeros((8,), jnp.float32)
    if act_id in (-1, -2, -9):
        w8 = jnp.full((8,), init, jnp.float32)
    elif act_id == -3:
        w8 = jax.random.uniform(key, (8,), jnp.float32, 0.0, 2.0)
    elif act_id == -4:
        w8 = w8.at[:4].set(jax.random.uniform(key, (4,), jnp.float32, 0.0, 2.0))
    elif act_id in (-5, -6, -7, -8, -10):
        w8 = w8.at[:4].set(jnp.full((4,), init, jnp.float32))
    elif act_id == 3:
        w8 = w8.at[0].set(0.25)          # nn.PReLU default init
    elif act_id in (91, 92, 93):
        w8 = w8.at[:6].set(jax.random.uniform(key, (6,), jnp.float32, 0.0, 2.0))
    return w8


if __name__ == "__main__":
    key = jax.random.PRNGKey(0)
    kx, kw = jax.random.split(key)

    # NCHW input, scaled so values hit many piecewise bins.
    x = jax.random.normal(kx, (2, 4, 16, 16), jnp.float32) * 12.0

    test_ids = [-1, -2, -3, -4, -5, -6, -7, -8, -9, -10,
                1, 2, 3, 4, 5, 6, 7, 8, 91, 92, 93]
    for act_id in test_ids:
        w8 = make_weight(act_id, kw)
        out = jax.block_until_ready(activate_pallas(x, w8, act_id=act_id))
        ref = _reference_activation(act_id, x, w8)
        assert out.shape == x.shape and out.dtype == x.dtype
        if not jnp.allclose(out, ref, rtol=1e-5, atol=1e-4):
            raise AssertionError(f"mismatch for act_id={act_id}")

    # Larger input exercising the multi-tile pipelined grid (grid > 1).
    x_big = jax.random.normal(kx, (4, 16, 128, 128), jnp.float32) * 12.0
    for act_id in (-1, 7):
        w8 = make_weight(act_id, kw)
        out = jax.block_until_ready(activate_pallas(x_big, w8, act_id=act_id))
        ref = _reference_activation(act_id, x_big, w8)
        if not jnp.allclose(out, ref, rtol=1e-5, atol=1e-4):
            raise AssertionError(f"big-input mismatch for act_id={act_id}")

    # Ragged element count exercising the padding fallback path.
    x_rag = jax.random.normal(kx, (3, 5, 7, 11), jnp.float32) * 12.0
    for act_id in (92,):
        w8 = make_weight(act_id, kw)
        out = jax.block_until_ready(activate_pallas(x_rag, w8, act_id=act_id))
        ref = _reference_activation(act_id, x_rag, w8)
        if not jnp.allclose(out, ref, rtol=1e-5, atol=1e-4):
            raise AssertionError(f"ragged-input mismatch for act_id={act_id}")

    print("KERNEL_OK")
</pallas_src>

<mosaic_0001>
module attributes {stable_mosaic.version = 11 : i64} {
  func.func @kernel(%arg0: i32, %arg1: memref<8xf32, #tpu.memory_space<smem>>, %arg2: memref<2x1024xf32, #tpu.memory_space<vmem>>, %arg3: memref<2x1024xf32, #tpu.memory_space<vmem>>) attributes {dimension_semantics = [#tpu.dimension_semantics<parallel>], iteration_bounds = array<i64: 1>, scalar_prefetch = 1 : i64, scratch_operands = 0 : i64, tpu.core_type = #tpu.core_type<tc>, window_params = [{transform_indices = @transform_0, window_bounds = array<i64: 2, 1024>}, {transform_indices = @transform_1, window_bounds = array<i64: 2, 1024>}]} {
    %c0 = arith.constant 0 : index
    %c0_0 = arith.constant 0 : index
    %0 = vector.load %arg2[%c0, %c0_0] : memref<2x1024xf32, #tpu.memory_space<vmem>>, vector<2x1024xf32>
    %c0_1 = arith.constant 0 : index
    %1 = memref.load %arg1[%c0_1] : memref<8xf32, #tpu.memory_space<smem>>
    %c1 = arith.constant 1 : index
    %2 = memref.load %arg1[%c1] : memref<8xf32, #tpu.memory_space<smem>>
    %c2 = arith.constant 2 : index
    %3 = memref.load %arg1[%c2] : memref<8xf32, #tpu.memory_space<smem>>
    %c3 = arith.constant 3 : index
    %4 = memref.load %arg1[%c3] : memref<8xf32, #tpu.memory_space<smem>>
    %c4 = arith.constant 4 : index
    %5 = memref.load %arg1[%c4] : memref<8xf32, #tpu.memory_space<smem>>
    %c5 = arith.constant 5 : index
    %6 = memref.load %arg1[%c5] : memref<8xf32, #tpu.memory_space<smem>>
    %c6 = arith.constant 6 : index
    %7 = memref.load %arg1[%c6] : memref<8xf32, #tpu.memory_space<smem>>
    %c7 = arith.constant 7 : index
    %8 = memref.load %arg1[%c7] : memref<8xf32, #tpu.memory_space<smem>>
    %cst = arith.constant 7.000000e+00 : f32
    %9 = vector.broadcast %cst : f32 to vector<2x1024xf32>
    %10 = arith.cmpf olt, %0, %9 : vector<2x1024xf32>
    %11 = vector.broadcast %7 : f32 to vector<2x1024xf32>
    %12 = vector.broadcast %8 : f32 to vector<2x1024xf32>
    %13 = arith.select %10, %11, %12 : vector<2x1024xi1>, vector<2x1024xf32>
    %cst_2 = arith.constant 3.000000e+00 : f32
    %14 = vector.broadcast %cst_2 : f32 to vector<2x1024xf32>
    %15 = arith.cmpf olt, %0, %14 : vector<2x1024xf32>
    %16 = vector.broadcast %6 : f32 to vector<2x1024xf32>
    %17 = arith.select %15, %16, %13 : vector<2x1024xi1>, vector<2x1024xf32>
    %cst_3 = arith.constant 1.000000e+00 : f32
    %18 = vector.broadcast %cst_3 : f32 to vector<2x1024xf32>
    %19 = arith.cmpf olt, %0, %18 : vector<2x1024xf32>
    %20 = vector.broadcast %5 : f32 to vector<2x1024xf32>
    %21 = arith.select %19, %20, %17 : vector<2x1024xi1>, vector<2x1024xf32>
    %cst_4 = arith.constant 0.000000e+00 : f32
    %22 = vector.broadcast %cst_4 : f32 to vector<2x1024xf32>
    %23 = arith.cmpf olt, %0, %22 : vector<2x1024xf32>
    %24 = vector.broadcast %4 : f32 to vector<2x1024xf32>
    %25 = arith.select %23, %24, %21 : vector<2x1024xi1>, vector<2x1024xf32>
    %cst_5 = arith.constant -1.000000e+00 : f32
    %26 = vector.broadcast %cst_5 : f32 to vector<2x1024xf32>
    %27 = arith.cmpf olt, %0, %26 : vector<2x1024xf32>
    %28 = vector.broadcast %3 : f32 to vector<2x1024xf32>
    %29 = arith.select %27, %28, %25 : vector<2x1024xi1>, vector<2x1024xf32>
    %cst_6 = arith.constant -3.000000e+00 : f32
    %30 = vector.broadcast %cst_6 : f32 to vector<2x1024xf32>
    %31 = arith.cmpf olt, %0, %30 : vector<2x1024xf32>
    %32 = vector.broadcast %2 : f32 to vector<2x1024xf32>
    %33 = arith.select %31, %32, %29 : vector<2x1024xi1>, vector<2x1024xf32>
    %cst_7 = arith.constant -7.000000e+00 : f32
    %34 = vector.broadcast %cst_7 : f32 to vector<2x1024xf32>
    %35 = arith.cmpf olt, %0, %34 : vector<2x1024xf32>
    %36 = vector.broadcast %1 : f32 to vector<2x1024xf32>
    %37 = arith.select %35, %36, %33 : vector<2x1024xi1>, vector<2x1024xf32>
    %38 = arith.mulf %0, %37 : vector<2x1024xf32>
    %c0_8 = arith.constant 0 : index
    %c0_9 = arith.constant 0 : index
    %39 = vector.load %arg3[%c0_8, %c0_9] : memref<2x1024xf32, #tpu.memory_space<vmem>>, vector<2x1024xf32>
    tpu.vector_store %arg3[%c0_8, %c0_9], %38 {strides = array<i32>} : memref<2x1024xf32, #tpu.memory_space<vmem>>, vector<2x1024xf32>,
    return
  }
  func.func @transform_0(%arg0: i32, %arg1: memref<8xf32, #tpu.memory_space<smem>>) -> (i32, i32) {
    %c0_i32 = arith.constant 0 : i32
    %c0_i32_0 = arith.constant 0 : i32
    return %arg0, %c0_i32 : i32, i32
  }
  func.func @transform_1(%arg0: i32, %arg1: memref<8xf32, #tpu.memory_space<smem>>) -> (i32, i32) {
    %c0_i32 = arith.constant 0 : i32
    %c0_i32_0 = arith.constant 0 : i32
    return %arg0, %c0_i32 : i32, i32
  }
}

</mosaic_0001>

<llo_original>
// kernel: activate_pallas.1
$region0: #{activate_pallas.1}
  #allocation0 [shape = 'u32[]', space=smem, size = 0x4, offset = 0x4, fixed_abs, tag = 'smem constant byte address 0x4 - core index']
  #allocation1 [shape = 'u32[144,128]{1,0:T(1,128)}', space=vmem, size = 0x12000, scoped, tag = 'internal scratch']
  #allocation2 [shape = 's32[1]{0}', space=sflag, size = 0x4, scoped, tag = 'scoped memory for activate_pallas.1']
  #allocation3 [shape = 'u8[512]{0}', space=smem, size = 0x200, scoped, tag = 'prefetched SMEM operand 0']
  %s0 = inlined_call_operand.vmem [shape: f32[8], index: 0, kind: input, shape index: {}]
  %s1 = inlined_call_operand.vmem [shape: f32[2,1024], index: 1, kind: input, shape index: {}]
  %s2 = inlined_call_operand.vmem [shape: f32[2,1024], index: 2, kind: output, shape index: {}]
  %s3 = sld [smem:[#allocation0]]
  $region14: #{activate_pallas.1} parent=0
    _
  %s5 = ssub.s32 1, %s3
  %s6 = scalar_select 0, %s5, %s3
  %s7 = sshll.u32 %s0, 4
  %s8 = int_to_ptr.vmem [resolvable:$true] %s7
  %10 = dma.vmem_to_smem %s8, 16, [#allocation3], [#allocation2]
  %11 = dma.done [#allocation2], 16
  %12 = sfence
  // Predicated region
  $region2: #{activate_pallas.1} parent=0 // pred_check
    _
  $region3: #{activate_pallas.1} parent=0 // pred_check_branch
    %14 = sbr.rel (0) target = $region5
  $region4: #{activate_pallas.1} parent=0 // pred_region
    _
  $region5: #{activate_pallas.1} parent=0 // pred_fallthru
    _
  %v15 = vld [vmem:[%s1] sm:$0xff]
  %v16 = vld [vmem:[%s1 + $0x8] sm:$0xff]
  %s17 = sld [smem:[#allocation3]]
  %s18 = sld [smem:[#allocation3 + $0x1]]
  %s19 = sld [smem:[#allocation3 + $0x2]]
  %s20 = sld [smem:[#allocation3 + $0x3]]
  %s21 = sld [smem:[#allocation3 + $0x4]]
  %s22 = sld [smem:[#allocation3 + $0x5]]
  %s23 = sld [smem:[#allocation3 + $0x6]]
  %s24 = sld [smem:[#allocation3 + $0x7]]
  %vm25 = vcmp.lt.f32.partialorder %v15, 7.0
  %vm26 = vcmp.lt.f32.partialorder %v16, 7.0
  %v27 = vstv %s23
  %v28 = vstv %s24
  %v29 = vsel %vm25, %v27, %v28
  %v30 = vsel %vm26, %v27, %v28
  %vm31 = vcmp.lt.f32.partialorder %v15, 3.0
  %vm32 = vcmp.lt.f32.partialorder %v16, 3.0
  %v33 = vstv %s22
  %v34 = vsel %vm31, %v33, %v29
  %v35 = vsel %vm32, %v33, %v30
  %vm36 = vcmp.lt.f32.partialorder %v15, 1.0
  %vm37 = vcmp.lt.f32.partialorder %v16, 1.0
  %v38 = vstv %s21
  %v39 = vsel %vm36, %v38, %v34
  %v40 = vsel %vm37, %v38, %v35
  %vm41 = vcmp.lt.f32.partialorder %v15, 0.0
  %vm42 = vcmp.lt.f32.partialorder %v16, 0.0
  %v43 = vstv %s20
  %v44 = vsel %vm41, %v43, %v39
  %v45 = vsel %vm42, %v43, %v40
  %vm46 = vcmp.lt.f32.partialorder %v15, -1.0
  %vm47 = vcmp.lt.f32.partialorder %v16, -1.0
  %v48 = vstv %s19
  %v49 = vsel %vm46, %v48, %v44
  %v50 = vsel %vm47, %v48, %v45
  %vm51 = vcmp.lt.f32.partialorder %v15, -3.0
  %vm52 = vcmp.lt.f32.partialorder %v16, -3.0
  %v53 = vstv %s18
  %v54 = vsel %vm51, %v53, %v49
  %v55 = vsel %vm52, %v53, %v50
  %vm56 = vcmp.lt.f32.partialorder %v15, -7.0
  %vm57 = vcmp.lt.f32.partialorder %v16, -7.0
  %v58 = vstv %s17
  %v59 = vsel %vm56, %v58, %v54
  %v60 = vsel %vm57, %v58, %v55
  %v61 = vmul.f32 %v15, %v59
  %v62 = vmul.f32 %v16, %v60
  %63 = vst [vmem:[%s2] sm:$0xff] %v61
  %64 = vst [vmem:[%s2 + $0x8] sm:$0xff] %v62
  // Predicated region
  $region6: #{activate_pallas.1} parent=0 // pred_check
    _
  $region7: #{activate_pallas.1} parent=0 // pred_check_branch
    %66 = sbr.rel (0) target = $region9
  $region8: #{activate_pallas.1} parent=0 // pred_region
    _
  $region9: #{activate_pallas.1} parent=0 // pred_fallthru
    _
  // Predicated region
  $region10: #{activate_pallas.1} parent=0 // pred_check
    _
  $region11: #{activate_pallas.1} parent=0 // pred_check_branch
    %68 = sbr.rel (0) target = $region13
  $region12: #{activate_pallas.1} parent=0 // pred_region
    _
  $region13: #{activate_pallas.1} parent=0 // pred_fallthru
    _

</llo_original>
